<compile_context>
chip_gen: v5e
topology: v5e:2x2
jax: 0.10.0
libtpu: 0.0.40
codegen_flags: <defaults>
</compile_context>

<pallas_src>
import functools

import jax
import jax.numpy as jnp
from jax import lax
from jax.experimental import pallas as pl
from jax.experimental.pallas import tpu as pltpu

MASK_BIG = 1e30      # additive mask bias magnitude (0 where edge, -1e30 otherwise)
NEG_CLAMP = -1e29    # row-max clamp so exp() underflows masked / empty rows to exactly 0
BN_EPS = 1e-5


# ----------------------------------------------------------------------------
# Kernel 1: stacked per-relation GATv2 lin_l projection of the SOURCE nodes.
#   LT[r] = W_l[r] @ x_src^T + b_l[r]  ->  [R, hid, Ns]  (bf16, sources on the lane axis)
# All relations share one wide MXU matmul ([R*hid, cin] x [cin, tNs]); the source axis
# is tiled so large graphs never blow VMEM.
# ----------------------------------------------------------------------------
def project_src_kernel(x_ref, w_ref, b_ref, lt_ref, *, num_rel, hid):
    xb = x_ref[...].astype(jnp.bfloat16)                                    # [tNs, cin]
    lt = lax.dot_general(w_ref[...], xb, (((1,), (1,)), ((), ())),
                         preferred_element_type=jnp.float32) + b_ref[...]   # [R*hid, tNs]
    ltb = lt.astype(jnp.bfloat16)
    for r in range(num_rel):
        lt_ref[r] = ltb[r * hid:(r + 1) * hid, :]


def project_sources(x_src, wl_stack, bl_stack, num_rel):
    n_src, cin = x_src.shape
    rh = wl_stack.shape[0]
    hid = rh // num_rel
    tns = n_src if n_src <= 512 else 512
    grid = (pl.cdiv(n_src, tns),)
    grid_spec = pltpu.PrefetchScalarGridSpec(
        num_scalar_prefetch=0,
        grid=grid,
        in_specs=[pl.BlockSpec((tns, cin), lambda i: (i, 0)),
                  pl.BlockSpec((rh, cin), lambda i: (0, 0)),
                  pl.BlockSpec((rh, 1), lambda i: (0, 0))],
        out_specs=pl.BlockSpec((num_rel, hid, tns), lambda i: (0, 0, i)),
    )
    return pl.pallas_call(
        functools.partial(project_src_kernel, num_rel=num_rel, hid=hid),
        out_shape=jax.ShapeDtypeStruct((num_rel, hid, n_src), jnp.bfloat16),
        grid_spec=grid_spec,
        compiler_params=pltpu.CompilerParams(dimension_semantics=("parallel",)),
    )(x_src, wl_stack, bl_stack)


# ----------------------------------------------------------------------------
# Kernel 2: stacked TARGET projections + skip Linear in one wide matmul.
#   x_tgt @ [W_r(0) | ... | W_r(R-1) | W_skip]  ->  T[r]=[R, Nt, hid], skip=[Nt, hid] (bf16)
# ----------------------------------------------------------------------------
def project_tgt_kernel(x_ref, w_ref, b_ref, t_ref, skip_ref, *, num_rel, hid):
    y = jnp.dot(x_ref[...].astype(jnp.bfloat16), w_ref[...],
                preferred_element_type=jnp.float32) + b_ref[...]            # [tm, (R+1)*hid]
    yb = y.astype(jnp.bfloat16)
    for r in range(num_rel):
        t_ref[r] = yb[:, r * hid:(r + 1) * hid]
    skip_ref[...] = yb[:, num_rel * hid:]


def project_targets(x_tgt, w_cat, b_cat, num_rel):
    n_tgt, cin = x_tgt.shape
    width = w_cat.shape[1]
    hid = width // (num_rel + 1)
    tm = n_tgt if n_tgt <= 1024 else 1024
    grid = (pl.cdiv(n_tgt, tm),)
    grid_spec = pltpu.PrefetchScalarGridSpec(
        num_scalar_prefetch=0,
        grid=grid,
        in_specs=[pl.BlockSpec((tm, cin), lambda i: (i, 0)),
                  pl.BlockSpec((cin, width), lambda i: (0, 0)),
                  pl.BlockSpec((1, width), lambda i: (0, 0))],
        out_specs=[pl.BlockSpec((num_rel, tm, hid), lambda i: (0, i, 0)),
                   pl.BlockSpec((tm, hid), lambda i: (i, 0))],
    )
    return pl.pallas_call(
        functools.partial(project_tgt_kernel, num_rel=num_rel, hid=hid),
        out_shape=(jax.ShapeDtypeStruct((num_rel, n_tgt, hid), jnp.bfloat16),
                   jax.ShapeDtypeStruct((n_tgt, hid), jnp.bfloat16)),
        grid_spec=grid_spec,
        compiler_params=pltpu.CompilerParams(dimension_semantics=("parallel",)),
    )(x_tgt, w_cat, b_cat)


# ----------------------------------------------------------------------------
# Kernel 3: relational GATv2 attention + skip + folded BN + ELU.
#   grid = (target tiles [parallel], relations [arbitrary]); the output block is an
#   accumulator resident across the relation axis.
# ----------------------------------------------------------------------------
def rgat_attn_kernel(lt_ref, t_ref, skip_ref, att_ref, cb_ref, sc_ref, sh_ref,
                     mask_ref, out_ref, o_scratch, *, heads, head_dim, lt_resident):
    r = pl.program_id(1)

    @pl.when(r == 0)
    def _init():                       # skip connection Linear(x_target), precomputed
        out_ref[...] = skip_ref[...].astype(jnp.float32)

    # lin_l(x_src)^T for relation r, kept bf16 (no whole-block f32 upcast).
    l_rel = lt_ref[r] if lt_resident else lt_ref[0]              # [hid, Ns] bf16
    t32 = t_ref[0].astype(jnp.float32)                           # [tNt, hid]
    att = att_ref[0]                                             # [1, hid]
    att04 = att * 0.4
    att06 = att * 0.6

    # additive mask bias shared by all heads: 0 where an edge exists, -1e30 otherwise.
    bias = (mask_ref[0].astype(jnp.float32) - 1.0) * MASK_BIG    # [tNt, Ns]

    for h in range(heads):
        base = h * head_dim
        lh = l_rel[base:base + head_dim, :]                      # [d, Ns] bf16

        # e_h = sum_k att_k * LeakyReLU(T[:,c] + L[c,:], 0.2)
        #     = sum_k 0.6*att_k*(T[:,c] + L[c,:]) + sum_k 0.4*att_k*|T[:,c] + L[c,:]|
        # The linear part collapses into two rank-1 terms (lin_t per target row,
        # lin_l per source); only the |.| term does full [tNt, Ns] VPU work.
        # TODO(synk): block the Ns axis (flash-style online softmax) for very large Ns.
        acc = None
        lin_t = None
        lin_l = None
        for k in range(head_dim):
            c = base + k
            t_c = t32[:, c:c + 1]                                # [tNt, 1]
            l_c = lh[k:k + 1, :].astype(jnp.float32)             # [1, Ns]
            z = jnp.abs(t_c + l_c) * att04[:, c:c + 1]           # [tNt, Ns]
            acc = z if acc is None else acc + z
            tc = t_c * att06[:, c:c + 1]
            lc = l_c * att06[:, c:c + 1]
            lin_t = tc if lin_t is None else lin_t + tc
            lin_l = lc if lin_l is None else lin_l + lc

        e = acc + bias + lin_t + lin_l                           # [tNt, Ns]

        # masked softmax over source nodes; masked logits sit at ~-1e30 and the clamped
        # row max makes exp() underflow them (and fully-masked rows) to exactly 0.
        m = jnp.maximum(jnp.max(e, axis=-1, keepdims=True), NEG_CLAMP)
        p = jnp.exp(e - m)
        denom = jnp.sum(p, axis=-1, keepdims=True)
        inv = pl.reciprocal(jnp.maximum(denom, 1e-30), approx=True)

        # MXU aggregation over sources: o_h = p_h @ lin_l(x_src)_h  (contract Ns)
        o_h = lax.dot_general(p.astype(jnp.bfloat16), lh,
                              (((1,), (1,)), ((), ())),
                              preferred_element_type=jnp.float32)            # [tNt, d]
        o_scratch[:, base:base + head_dim] = o_h * inv

    # GATv2 output bias, folded eval BatchNorm1d (gated by has_edges), accumulate.
    out_ref[...] += (o_scratch[...] + cb_ref[0]) * sc_ref[0] + sh_ref[0]

    @pl.when(r == pl.num_programs(1) - 1)
    def _finish():                                               # dropout (eval) = id, then ELU
        y = out_ref[...]
        out_ref[...] = jnp.where(y > 0.0, y, jnp.expm1(jnp.minimum(y, 0.0)))


def rgat_attention(lt, t3, skip, att, conv_b, bn_scale, bn_shift, mask, *, heads):
    num_rel, hid, n_src = lt.shape
    n_tgt = t3.shape[1]
    head_dim = hid // heads
    # target row tile: multiple of 32 keeps the int8 mask block tile-aligned.
    tnt = n_tgt if n_tgt <= 256 else 256
    grid = (pl.cdiv(n_tgt, tnt), num_rel)

    # Keep LT (all relations) VMEM-resident across the whole grid when it fits (single
    # HBM fetch instead of n_tgt_tiles * num_rel); stream per relation otherwise (v7x).
    lt_bytes = num_rel * hid * n_src * 2
    lt_resident = lt_bytes <= 8 * 1024 * 1024
    if lt_resident:
        lt_spec = pl.BlockSpec((num_rel, hid, n_src), lambda i, r: (0, 0, 0))
    else:
        lt_spec = pl.BlockSpec((1, hid, n_src), lambda i, r: (r, 0, 0))

    per_rel_vec = lambda i, r: (r, 0, 0)
    grid_spec = pltpu.PrefetchScalarGridSpec(
        num_scalar_prefetch=0,
        grid=grid,
        in_specs=[
            lt_spec,                                                  # LT (bf16)
            pl.BlockSpec((1, tnt, hid), lambda i, r: (r, i, 0)),      # T = lin_r(x_target)
            pl.BlockSpec((tnt, hid), lambda i, r: (i, 0)),            # skip Linear(x_target)
            pl.BlockSpec((1, 1, hid), per_rel_vec),                   # attention vector
            pl.BlockSpec((1, 1, hid), per_rel_vec),                   # GATv2 output bias
            pl.BlockSpec((1, 1, hid), per_rel_vec),                   # BN scale (gated)
            pl.BlockSpec((1, 1, hid), per_rel_vec),                   # BN shift (gated)
            pl.BlockSpec((1, tnt, n_src), lambda i, r: (r, i, 0)),    # adjacency mask (int8)
        ],
        out_specs=pl.BlockSpec((tnt, hid), lambda i, r: (i, 0)),
        scratch_shapes=[pltpu.VMEM((tnt, hid), jnp.float32)],
    )

    # VMEM budget from the actual block sum (+50% headroom), instead of a fixed limit.
    lt_vmem = 2 * (lt_bytes if lt_resident else hid * n_src * 2)
    est = (lt_vmem
           + 2 * tnt * n_src                # int8 mask, double buffered
           + 2 * 2 * tnt * hid * 2          # T + skip blocks (bf16), double buffered
           + 2 * tnt * hid * 4              # out block + f32 head scratch
           + 4 * tnt * n_src * 4            # acc / bias / e / p f32 working tiles
           + 8 * 2 * hid * 4)               # per-relation vectors
    vmem_limit = int(min(100 * 1024 * 1024, max(16 * 1024 * 1024, est * 3 // 2)))

    return pl.pallas_call(
        functools.partial(rgat_attn_kernel, heads=heads, head_dim=head_dim,
                          lt_resident=lt_resident),
        out_shape=jax.ShapeDtypeStruct((n_tgt, hid), jnp.float32),
        grid_spec=grid_spec,
        compiler_params=pltpu.CompilerParams(
            dimension_semantics=("parallel", "arbitrary"),
            vmem_limit_bytes=vmem_limit),
    )(lt, t3, skip, att, conv_b, bn_scale, bn_shift, mask)


# ----------------------------------------------------------------------------
# Kernel 4: projection head = Linear -> BatchNorm1d (eval, folded) -> PReLU.
# ----------------------------------------------------------------------------
def proj_head_kernel(x_ref, w_ref, b_ref, sc_ref, sh_ref, slope_ref, o_ref):
    y = jnp.dot(x_ref[...].astype(jnp.bfloat16), w_ref[...],
                preferred_element_type=jnp.float32) + b_ref[...]
    y = y * sc_ref[...] + sh_ref[...]
    o_ref[...] = jnp.where(y > 0.0, y, slope_ref[...] * y)


def projection_head(x, pp):
    n, hid = x.shape
    tm = n if n <= 1024 else 1024
    grid = (pl.cdiv(n, tm),)
    grid_spec = pltpu.PrefetchScalarGridSpec(
        num_scalar_prefetch=0,
        grid=grid,
        in_specs=[pl.BlockSpec((tm, hid), lambda i: (i, 0)),
                  pl.BlockSpec((hid, hid), lambda i: (0, 0)),
                  pl.BlockSpec((1, hid), lambda i: (0, 0)),
                  pl.BlockSpec((1, hid), lambda i: (0, 0)),
                  pl.BlockSpec((1, hid), lambda i: (0, 0)),
                  pl.BlockSpec((1, 1), lambda i: (0, 0))],
        out_specs=pl.BlockSpec((tm, hid), lambda i: (i, 0)),
    )
    return pl.pallas_call(
        proj_head_kernel,
        out_shape=jax.ShapeDtypeStruct((n, hid), jnp.float32),
        grid_spec=grid_spec,
        compiler_params=pltpu.CompilerParams(dimension_semantics=("parallel",)),
    )(x, pp["w"], pp["b"], pp["bn_scale"], pp["bn_shift"], pp["prelu"])


# ----------------------------------------------------------------------------
# Parameter init (deterministic, synthetic) + full forward
# ----------------------------------------------------------------------------
def init_params(key, in_channels, hidden, heads, num_relations, num_layers):
    d = hidden // heads
    layers = []
    cin = in_channels
    for i in range(num_layers):
        ks = jax.random.split(jax.random.fold_in(key, i), 10)
        w_skip = 0.1 * jax.random.normal(ks[0], (cin, hidden), jnp.float32)
        b_skip = 0.1 * jax.random.normal(ks[1], (1, hidden), jnp.float32)
        w_l = 0.1 * jax.random.normal(ks[2], (num_relations, hidden, cin), jnp.float32)  # [out,in]
        b_l = 0.1 * jax.random.normal(ks[3], (num_relations, hidden, 1), jnp.float32)
        w_r = 0.1 * jax.random.normal(ks[4], (num_relations, cin, hidden), jnp.float32)  # [in,out]
        b_r = 0.1 * jax.random.normal(ks[5], (num_relations, 1, hidden), jnp.float32)
        att = 0.1 * jax.random.normal(ks[6], (num_relations, heads, d), jnp.float32)
        conv_b = 0.1 * jax.random.normal(ks[7], (num_relations, 1, hidden), jnp.float32)

        gamma = 1.0 + 0.1 * jax.random.normal(ks[8], (num_relations, 1, hidden), jnp.float32)
        beta = 0.1 * jax.random.normal(ks[9], (num_relations, 1, hidden), jnp.float32)
        run_mean = jnp.zeros((num_relations, 1, hidden), jnp.float32)
        run_var = jnp.ones((num_relations, 1, hidden), jnp.float32)
        bn_scale = gamma / jnp.sqrt(run_var + BN_EPS)
        bn_shift = beta - run_mean * bn_scale

        # MXU-friendly stacked layouts: one wide matmul per side for all relations (+ skip).
        wl_stack = w_l.reshape(num_relations * hidden, cin).astype(jnp.bfloat16)
        bl_stack = b_l.reshape(num_relations * hidden, 1)
        w_cat = jnp.concatenate(
            [w_r.transpose(1, 0, 2).reshape(cin, num_relations * hidden), w_skip],
            axis=1).astype(jnp.bfloat16)
        b_cat = jnp.concatenate(
            [b_r.transpose(1, 0, 2).reshape(1, num_relations * hidden), b_skip], axis=1)

        layers.append(dict(
            wl_stack=wl_stack, bl_stack=bl_stack, w_cat=w_cat, b_cat=b_cat,
            att=att.reshape(num_relations, 1, hidden),          # flat index h*d + k
            conv_b=conv_b, bn_scale=bn_scale, bn_shift=bn_shift,
        ))
        cin = hidden

    pk = jax.random.split(jax.random.fold_in(key, 10_000), 4)
    gamma = 1.0 + 0.1 * jax.random.normal(pk[2], (1, hidden), jnp.float32)
    beta = 0.1 * jax.random.normal(pk[3], (1, hidden), jnp.float32)
    proj = dict(
        w=(0.1 * jax.random.normal(pk[0], (hidden, hidden), jnp.float32)).astype(jnp.bfloat16),
        b=0.1 * jax.random.normal(pk[1], (1, hidden), jnp.float32),
        bn_scale=gamma / jnp.sqrt(1.0 + BN_EPS),
        bn_shift=beta,
        prelu=jnp.full((1, 1), 0.25, jnp.float32),   # torch.nn.PReLU default init
    )
    return layers, proj


def rgnn_forward(adjs_t, layer_params, proj_params, num_relations, heads):
    curr_target = None
    x = None
    for i, (x_in, edge_index, edge_attrs, adj_t_size) in enumerate(adjs_t):
        x = curr_target if curr_target is not None else x_in
        n_src = x.shape[0]
        n_tgt = adj_t_size
        lp = layer_params[i]

        # dense int8 per-relation adjacency mask mask[r, dst, src]  (JAX glue)
        # Note: duplicate (src,dst,rel) edges collapse to a single entry.
        # TODO(synk): bit-pack 32 sources per uint32 lane for a further 8x DMA cut.
        mask = jnp.zeros((num_relations, n_tgt, n_src), jnp.int8)
        mask = mask.at[edge_attrs, edge_index[1], edge_index[0]].set(1)
        # "(edge_attrs == j).sum() > 0" gate, folded into the BN scale/shift
        has = (jnp.sum(edge_attrs[None, :] == jnp.arange(num_relations)[:, None],
                       axis=1) > 0).astype(jnp.float32).reshape(num_relations, 1, 1)
        bn_scale = lp["bn_scale"] * has
        bn_shift = lp["bn_shift"] * has

        x_tgt = x[:n_tgt]
        lt = project_sources(x, lp["wl_stack"], lp["bl_stack"], num_relations)      # [R,hid,Ns]
        t3, skip = project_targets(x_tgt, lp["w_cat"], lp["b_cat"], num_relations)  # [R,Nt,hid],[Nt,hid]
        x = rgat_attention(lt, t3, skip, lp["att"], lp["conv_b"],
                           bn_scale, bn_shift, mask, heads=heads)
        curr_target = x
    return x, projection_head(x, proj_params)


if __name__ == "__main__":
    key = jax.random.PRNGKey(0)
    in_channels, hidden, heads = 16, 32, 4
    num_relations, num_layers = 3, 2
    N0, N1, N2 = 16, 8, 4          # sources layer0, targets layer0 / sources layer1, targets layer1
    E0, E1 = 24, 12

    k_feat, k_e0, k_e1, k_par = jax.random.split(key, 4)
    x0 = jax.random.normal(k_feat, (N0, in_channels), jnp.float32)

    ks = jax.random.split(k_e0, 3)
    ei0 = jnp.stack([jax.random.randint(ks[0], (E0,), 0, N0),
                     jax.random.randint(ks[1], (E0,), 0, N1)]).astype(jnp.int32)
    ea0 = jax.random.randint(ks[2], (E0,), 0, num_relations).astype(jnp.int32)

    ks = jax.random.split(k_e1, 3)
    ei1 = jnp.stack([jax.random.randint(ks[0], (E1,), 0, N1),
                     jax.random.randint(ks[1], (E1,), 0, N2)]).astype(jnp.int32)
    ea1 = jax.random.randint(ks[2], (E1,), 0, num_relations).astype(jnp.int32)

    # adjs_t layer tuples: (x, edge_index, edge_attrs, adj_t_size); x for layer>0 is
    # replaced by curr_target inside the forward, exactly as in the PyTorch module.
    adjs_t = [(x0, ei0, ea0, N1), (None, ei1, ea1, N2)]

    layer_params, proj_params = init_params(k_par, in_channels, hidden, heads,
                                            num_relations, num_layers)

    x_out, proj_out = rgnn_forward(adjs_t, layer_params, proj_params,
                                   num_relations, heads)
    jax.block_until_ready((x_out, proj_out))
    assert x_out.shape == (N2, hidden) and proj_out.shape == (N2, hidden)
    assert bool(jnp.all(jnp.isfinite(x_out))) and bool(jnp.all(jnp.isfinite(proj_out)))
    print("KERNEL_OK")
</pallas_src>

<mosaic_0001>
module attributes {stable_mosaic.version = 11 : i64} {
  func.func @project_src_kernel(%arg0: i32, %arg1: memref<16x16xf32, #tpu.memory_space<vmem>>, %arg2: memref<96x16xbf16, #tpu.memory_space<vmem>>, %arg3: memref<96x1xf32, #tpu.memory_space<vmem>>, %arg4: memref<3x32x16xbf16, #tpu.memory_space<vmem>>) attributes {dimension_semantics = [#tpu.dimension_semantics<parallel>], iteration_bounds = array<i64: 1>, scalar_prefetch = 0 : i64, scratch_operands = 0 : i64, tpu.core_type = #tpu.core_type<tc>, window_params = [{transform_indices = @transform_0, window_bounds = array<i64: 16, 16>}, {pipeline_mode = #tpu.pipeline_mode<synchronous>, transform_indices = @transform_1, window_bounds = array<i64: 96, 16>}, {pipeline_mode = #tpu.pipeline_mode<synchronous>, transform_indices = @transform_2, window_bounds = array<i64: 96, 1>}, {transform_indices = @transform_3, window_bounds = array<i64: 3, 32, 16>}]} {
    %c0 = arith.constant 0 : index
    %c0_0 = arith.constant 0 : index
    %0 = vector.load %arg1[%c0, %c0_0] : memref<16x16xf32, #tpu.memory_space<vmem>>, vector<16x16xf32>
    %1 = arith.truncf %0 : vector<16x16xf32> to vector<16x16xbf16>
    %c0_1 = arith.constant 0 : index
    %c0_2 = arith.constant 0 : index
    %2 = vector.load %arg2[%c0_1, %c0_2] : memref<96x16xbf16, #tpu.memory_space<vmem>>, vector<96x16xbf16>
    %cst = arith.constant dense<0.000000e+00> : vector<96x16xf32>
    %3 = tpu.matmul %2, %1, %cst {dimension_numbers = #tpu.dot_dimension_numbers<[1], [1], [0], [0], [0, 0, 1, 0], [], []>} : vector<96x16xbf16>, vector<16x16xbf16>, vector<96x16xf32> -> vector<96x16xf32>
    %c0_3 = arith.constant 0 : index
    %c0_4 = arith.constant 0 : index
    %4 = vector.load %arg3[%c0_3, %c0_4] : memref<96x1xf32, #tpu.memory_space<vmem>>, vector<96x1xf32>
    %5 = vector.broadcast %4 : vector<96x1xf32> to vector<96x16xf32>
    %6 = arith.addf %3, %5 : vector<96x16xf32>
    %7 = arith.truncf %6 : vector<96x16xf32> to vector<96x16xbf16>
    %8 = vector.extract_strided_slice %7 {offsets = [0, 0], sizes = [32, 16], strides = [1, 1]} : vector<96x16xbf16> to vector<32x16xbf16>
    %c0_5 = arith.constant 0 : index
    %c0_6 = arith.constant 0 : index
    %c0_7 = arith.constant 0 : index
    %9 = vector.load %arg4[%c0_5, %c0_6, %c0_7] : memref<3x32x16xbf16, #tpu.memory_space<vmem>>, vector<1x32x16xbf16>
    %10 = vector.shape_cast %9 : vector<1x32x16xbf16> to vector<32x16xbf16>
    %11 = vector.shape_cast %8 : vector<32x16xbf16> to vector<1x32x16xbf16>
    tpu.vector_store %arg4[%c0_5, %c0_6, %c0_7], %11 {strides = array<i32>} : memref<3x32x16xbf16, #tpu.memory_space<vmem>>, vector<1x32x16xbf16>,
    %12 = vector.extract_strided_slice %7 {offsets = [32, 0], sizes = [32, 16], strides = [1, 1]} : vector<96x16xbf16> to vector<32x16xbf16>
    %c1 = arith.constant 1 : index
    %c0_8 = arith.constant 0 : index
    %c0_9 = arith.constant 0 : index
    %13 = vector.load %arg4[%c1, %c0_8, %c0_9] : memref<3x32x16xbf16, #tpu.memory_space<vmem>>, vector<1x32x16xbf16>
    %14 = vector.shape_cast %13 : vector<1x32x16xbf16> to vector<32x16xbf16>
    %15 = vector.shape_cast %12 : vector<32x16xbf16> to vector<1x32x16xbf16>
    tpu.vector_store %arg4[%c1, %c0_8, %c0_9], %15 {strides = array<i32>} : memref<3x32x16xbf16, #tpu.memory_space<vmem>>, vector<1x32x16xbf16>,
    %16 = vector.extract_strided_slice %7 {offsets = [64, 0], sizes = [32, 16], strides = [1, 1]} : vector<96x16xbf16> to vector<32x16xbf16>
    %c2 = arith.constant 2 : index
    %c0_10 = arith.constant 0 : index
    %c0_11 = arith.constant 0 : index
    %17 = vector.load %arg4[%c2, %c0_10, %c0_11] : memref<3x32x16xbf16, #tpu.memory_space<vmem>>, vector<1x32x16xbf16>
    %18 = vector.shape_cast %17 : vector<1x32x16xbf16> to vector<32x16xbf16>
    %19 = vector.shape_cast %16 : vector<32x16xbf16> to vector<1x32x16xbf16>
    tpu.vector_store %arg4[%c2, %c0_10, %c0_11], %19 {strides = array<i32>} : memref<3x32x16xbf16, #tpu.memory_space<vmem>>, vector<1x32x16xbf16>,
    return
  }
  func.func @transform_0(%arg0: i32) -> (i32, i32) {
    %c0_i32 = arith.constant 0 : i32
    %c0_i32_0 = arith.constant 0 : i32
    return %arg0, %c0_i32 : i32, i32
  }
  func.func @transform_1(%arg0: i32) -> (i32, i32) {
    %c0_i32 = arith.constant 0 : i32
    %c0_i32_0 = arith.constant 0 : i32
    %c0_i32_1 = arith.constant 0 : i32
    return %c0_i32, %c0_i32_0 : i32, i32
  }
  func.func @transform_2(%arg0: i32) -> (i32, i32) {
    %c0_i32 = arith.constant 0 : i32
    %c0_i32_0 = arith.constant 0 : i32
    %c0_i32_1 = arith.constant 0 : i32
    return %c0_i32, %c0_i32_0 : i32, i32
  }
  func.func @transform_3(%arg0: i32) -> (i32, i32, i32) {
    %c0_i32 = arith.constant 0 : i32
    %c0_i32_0 = arith.constant 0 : i32
    %c0_i32_1 = arith.constant 0 : i32
    return %c0_i32, %c0_i32_0, %arg0 : i32, i32, i32
  }
}

</mosaic_0001>

<llo_original>
// kernel: tpu_custom_call.1
$region0: #{tpu_custom_call.1}
  #allocation0 [shape = 'u32[]', space=smem, size = 0x4, offset = 0x4, fixed_abs, tag = 'smem constant byte address 0x4 - core index']
  #allocation1 [shape = 'u32[72,128]{1,0:T(1,128)}', space=vmem, size = 0x9000, scoped, tag = 'internal scratch']
  %s0 = inlined_call_operand.vmem [shape: f32[16,16], index: 0, kind: input, shape index: {}]
  %s1 = inlined_call_operand.vmem [shape: bf16[96,16], index: 1, kind: input, shape index: {}]
  %s2 = inlined_call_operand.vmem [shape: f32[96,1], index: 2, kind: input, shape index: {}]
  %s3 = inlined_call_operand.vmem [shape: bf16[3,32,16], index: 3, kind: output, shape index: {}]
  %s4 = sld [smem:[#allocation0]]
  $region22: #{tpu_custom_call.1} parent=0
    _
  %s6 = ssub.s32 1, %s4
  %s7 = scalar_select 0, %s6, %s4
  // Predicated region
  $region2: #{tpu_custom_call.1} parent=0 // pred_check
    _
  $region3: #{tpu_custom_call.1} parent=0 // pred_check_branch
    %9 = sbr.rel (0) target = $region5
  $region4: #{tpu_custom_call.1} parent=0 // pred_region
    _
  $region5: #{tpu_custom_call.1} parent=0 // pred_fallthru
    _
  // Predicated region
  $region6: #{tpu_custom_call.1} parent=0 // pred_check
    _
  $region7: #{tpu_custom_call.1} parent=0 // pred_check_branch
    %11 = sbr.rel (0) target = $region9
  $region8: #{tpu_custom_call.1} parent=0 // pred_region
    _
  $region9: #{tpu_custom_call.1} parent=0 // pred_fallthru
    _
  // Predicated region
  $region10: #{tpu_custom_call.1} parent=0 // pred_check
    _
  $region11: #{tpu_custom_call.1} parent=0 // pred_check_branch
    %13 = sbr.rel (0) target = $region13
  $region12: #{tpu_custom_call.1} parent=0 // pred_region
    _
  $region13: #{tpu_custom_call.1} parent=0 // pred_fallthru
    _
  %v15 = vld [vmem:[%s0] sm:$0xff]
  %v16 = vld [vmem:[%s0 + $0x8] sm:$0xff]
  %v17 = vpack.c.bf16 %v16, %v15
  %v18 = vld [vmem:[%s1] sm:$0xf]
  %v19 = vld [vmem:[%s1 + $0x4] sm:$0xf]
  %v20 = vld [vmem:[%s1 + $0x8] sm:$0xf]
  %v21 = vld [vmem:[%s1 + $0xc] sm:$0xf]
  %v22 = vld [vmem:[%s1 + $0x10] sm:$0xf]
  %v23 = vld [vmem:[%s1 + $0x14] sm:$0xf]
  %v24 = vld [vmem:[%s1 + $0x18] sm:$0xf]
  %v25 = vld [vmem:[%s1 + $0x1c] sm:$0xf]
  %v26 = vld [vmem:[%s1 + $0x20] sm:$0xf]
  %v27 = vld [vmem:[%s1 + $0x24] sm:$0xf]
  %v28 = vld [vmem:[%s1 + $0x28] sm:$0xf]
  %v29 = vld [vmem:[%s1 + $0x2c] sm:$0xf]
  %v30 = vld [vmem:[%s2] sm:$0xff]
  %v31 = vld [vmem:[%s2 + $0x8] sm:$0xff]
  %v32 = vld [vmem:[%s2 + $0x10] sm:$0xff]
  %v33 = vld [vmem:[%s2 + $0x18] sm:$0xff]
  %v34 = vld [vmem:[%s2 + $0x20] sm:$0xff]
  %v35 = vld [vmem:[%s2 + $0x28] sm:$0xff]
  %v36 = vld [vmem:[%s2 + $0x30] sm:$0xff]
  %v37 = vld [vmem:[%s2 + $0x38] sm:$0xff]
  %v38 = vld [vmem:[%s2 + $0x40] sm:$0xff]
  %v39 = vld [vmem:[%s2 + $0x48] sm:$0xff]
  %v40 = vld [vmem:[%s2 + $0x50] sm:$0xff]
  %v41 = vld [vmem:[%s2 + $0x58] sm:$0xff]
  %43 = vset.pattern.permute.xlu0 0
  %44 = vperm.xlu0 %43, %v30
  %v45 = vpop.permute.xlu0 %44
  %48 = vset.pattern.permute.xlu0 0
  %49 = vperm.xlu0 %48, %v31
  %v50 = vpop.permute.xlu0 %49
  %53 = vset.pattern.permute.xlu0 0
  %54 = vperm.xlu0 %53, %v32
  %v55 = vpop.permute.xlu0 %54
  %58 = vset.pattern.permute.xlu0 0
  %59 = vperm.xlu0 %58, %v33
  %v60 = vpop.permute.xlu0 %59
  %63 = vset.pattern.permute.xlu0 0
  %64 = vperm.xlu0 %63, %v34
  %v65 = vpop.permute.xlu0 %64
  %68 = vset.pattern.permute.xlu0 0
  %69 = vperm.xlu0 %68, %v35
  %v70 = vpop.permute.xlu0 %69
  %73 = vset.pattern.permute.xlu0 0
  %74 = vperm.xlu0 %73, %v36
  %v75 = vpop.permute.xlu0 %74
  %78 = vset.pattern.permute.xlu0 0
  %79 = vperm.xlu0 %78, %v37
  %v80 = vpop.permute.xlu0 %79
  %83 = vset.pattern.permute.xlu0 0
  %84 = vperm.xlu0 %83, %v38
  %v85 = vpop.permute.xlu0 %84
  %88 = vset.pattern.permute.xlu0 0
  %89 = vperm.xlu0 %88, %v39
  %v90 = vpop.permute.xlu0 %89
  %93 = vset.pattern.permute.xlu0 0
  %94 = vperm.xlu0 %93, %v40
  %v95 = vpop.permute.xlu0 %94
  %98 = vset.pattern.permute.xlu0 0
  %99 = vperm.xlu0 %98, %v41
  %v100 = vpop.permute.xlu0 %99
  %v114 = vunpack.c.l.b16 %v18
  %v115 = vunpack.c.l.b16 %v19
  %v116 = vunpack.c.l.b16 %v20
  %v117 = vunpack.c.l.b16 %v21
  %v118 = vunpack.c.l.b16 %v22
  %v119 = vunpack.c.l.b16 %v23
  %v120 = vunpack.c.l.b16 %v24
  %v121 = vunpack.c.l.b16 %v25
  %v122 = vunpack.c.l.b16 %v26
  %v123 = vunpack.c.l.b16 %v27
  %v124 = vunpack.c.l.b16 %v28
  %v125 = vunpack.c.l.b16 %v29
  %v126 = vpack.c.b16 %v115, %v114
  %v127 = vpack.c.b16 %v117, %v116
  %v128 = vpack.c.b16 %v119, %v118
  %v129 = vpack.c.b16 %v121, %v120
  %v130 = vpack.c.b16 %v123, %v122
  %v131 = vpack.c.b16 %v125, %v124
  %vm132 = vcmask 130048
  %v134 = vsel %vm132, %v126, 0
  %v137 = vsel %vm132, %v127, 0
  %v140 = vsel %vm132, %v128, 0
  %v143 = vsel %vm132, %v129, 0
  %v146 = vsel %vm132, %v130, 0
  %v149 = vsel %vm132, %v131, 0
  %v152 = vsel %vm132, %v17, 0
  %154 = vmatpush.bf16.xpose.msra.mxu0 0
  %155 = vmatpush.bf16.xpose.msra.mxu0 0
  %156 = vmatpush.bf16.xpose.msra.mxu0 0
  %157 = vmatpush.bf16.xpose.msra.mxu0 0
  %158 = vmatpush.bf16.xpose.msra.mxu0 0
  %159 = vmatpush.bf16.xpose.msra.mxu0 0
  %160 = vmatpush.bf16.xpose.msra.mxu0 0
  %161 = vmatpush.bf16.xpose.msra.mxu0 %v152
  %162 = vmatmul.bf16.gmra.mxu0 %v134
  %v163 = vpop.f32.mrf.mxu0
  %v164 = vadd.f32 %v45, %v163
  %v165 = vpop.f32.mrf.mxu0
  %v166 = vadd.f32 %v50, %v165
  %167 = vmatmul.bf16.gmra.mxu0 %v137
  %v168 = vpop.f32.mrf.mxu0
  %v169 = vadd.f32 %v55, %v168
  %v170 = vpop.f32.mrf.mxu0
  %v171 = vadd.f32 %v60, %v170
  %172 = vmatmul.bf16.gmra.mxu0 %v140
  %v173 = vpop.f32.mrf.mxu0
  %v174 = vadd.f32 %v65, %v173
  %v175 = vpop.f32.mrf.mxu0
  %v176 = vadd.f32 %v70, %v175
  %177 = vmatmul.bf16.gmra.mxu0 %v143
  %v178 = vpop.f32.mrf.mxu0
  %v179 = vadd.f32 %v75, %v178
  %v180 = vpop.f32.mrf.mxu0
  %v181 = vadd.f32 %v80, %v180
  %182 = vmatmul.bf16.gmra.mxu0 %v146
  %v183 = vpop.f32.mrf.mxu0
  %v184 = vadd.f32 %v85, %v183
  %v185 = vpop.f32.mrf.mxu0
  %v186 = vadd.f32 %v90, %v185
  %187 = vmatmul.bf16.gmra.mxu0 %v149
  %v188 = vpop.f32.mrf.mxu0
  %v189 = vadd.f32 %v95, %v188
  %v190 = vpop.f32.mrf.mxu0
  %v191 = vadd.f32 %v100, %v190
  %192 = vdwg.mxu0
  %v193 = vpack.c.bf16 %v164, %v164
  %v194 = vpack.c.bf16 %v166, %v166
  %v195 = vpack.c.bf16 %v169, %v169
  %v196 = vpack.c.bf16 %v171, %v171
  %v197 = vpack.c.bf16 %v174, %v174
  %v198 = vpack.c.bf16 %v176, %v176
  %v199 = vpack.c.bf16 %v179, %v179
  %v200 = vpack.c.bf16 %v181, %v181
  %v201 = vpack.c.bf16 %v184, %v184
  %v202 = vpack.c.bf16 %v186, %v186
  %v203 = vpack.c.bf16 %v189, %v189
  %v204 = vpack.c.bf16 %v191, %v191
  %vm205 = vcmask 125952
  %206 = vst.msk [vmem:[%s3] sm:$0xf] %vm205, %v193
  %207 = vst.msk [vmem:[%s3 + $0x4] sm:$0xf] %vm205, %v194
  %208 = vst.msk [vmem:[%s3 + $0x8] sm:$0xf] %vm205, %v195
  %209 = vst.msk [vmem:[%s3 + $0xc] sm:$0xf] %vm205, %v196
  %s210 = scalar_lea.vmem %s3, 16
  %211 = vst.msk [vmem:[%s210] sm:$0xf] %vm205, %v197
  %212 = vst.msk [vmem:[%s210 + $0x4] sm:$0xf] %vm205, %v198
  %213 = vst.msk [vmem:[%s210 + $0x8] sm:$0xf] %vm205, %v199
  %214 = vst.msk [vmem:[%s210 + $0xc] sm:$0xf] %vm205, %v200
  %s215 = scalar_lea.vmem %s3, 32
  %216 = vst.msk [vmem:[%s215] sm:$0xf] %vm205, %v201
  %217 = vst.msk [vmem:[%s215 + $0x4] sm:$0xf] %vm205, %v202
  %218 = vst.msk [vmem:[%s215 + $0x8] sm:$0xf] %vm205, %v203
  %219 = vst.msk [vmem:[%s215 + $0xc] sm:$0xf] %vm205, %v204
  // Predicated region
  $region14: #{tpu_custom_call.1} parent=0 // pred_check
    _
  $region15: #{tpu_custom_call.1} parent=0 // pred_check_branch
    %221 = sbr.rel (0) target = $region17
  $region16: #{tpu_custom_call.1} parent=0 // pred_region
    _
  $region17: #{tpu_custom_call.1} parent=0 // pred_fallthru
    _
  // Predicated region
  $region18: #{tpu_custom_call.1} parent=0 // pred_check
    _
  $region19: #{tpu_custom_call.1} parent=0 // pred_check_branch
    %223 = sbr.rel (0) target = $region21
  $region20: #{tpu_custom_call.1} parent=0 // pred_region
    _
  $region21: #{tpu_custom_call.1} parent=0 // pred_fallthru
    _

</llo_original>
